<compile_context>
chip_gen: v6e
topology: v6e:2x2x1
jax: 0.10.0
libtpu: 0.0.40
codegen_flags: <defaults>
</compile_context>

<pallas_src>
import functools

import jax
import jax.numpy as jnp
from jax.experimental import pallas as pl
from jax.experimental.pallas import tpu as pltpu

_EPS = 1e-5  # nn.InstanceNorm2d default


# ---------------------------------------------------------------------------
# Fused kernels: conv-as-matmul + bias + SiLU + InstanceNorm (+ residual).
# All refs are per-sample blocks; grid axis 0 runs over the batch.
# ---------------------------------------------------------------------------
def _conv_act_norm_kernel(p_ref, w_ref, b_ref, o_ref, *, use_norm):
    # p_ref: (1, K, HW) im2col patches^T, w_ref: (C_out, K), b_ref: (C_out, 1)
    p = p_ref[0].astype(jnp.float32)                       # (K, HW)
    w = w_ref[...].astype(jnp.float32)                     # (C_out, K)
    y = jnp.dot(w, p, preferred_element_type=jnp.float32)  # MXU, lane-dense out
    y = y + b_ref[...].astype(jnp.float32)
    y = y * jax.nn.sigmoid(y)                              # SiLU (EUP)
    if use_norm:                                           # InstanceNorm2d
        mean = jnp.mean(y, axis=-1, keepdims=True)         # lane-axis reduction
        yc = y - mean
        var = jnp.mean(yc * yc, axis=-1, keepdims=True)    # biased variance
        y = yc * jax.lax.rsqrt(var + _EPS)
    o_ref[0] = y.astype(o_ref.dtype)


def _conv_act_norm_res_kernel(p_ref, w_ref, b_ref, x_ref, o_ref, *, use_norm):
    p = p_ref[0].astype(jnp.float32)
    w = w_ref[...].astype(jnp.float32)
    y = jnp.dot(w, p, preferred_element_type=jnp.float32)
    y = y + b_ref[...].astype(jnp.float32)
    y = y * jax.nn.sigmoid(y)
    if use_norm:
        mean = jnp.mean(y, axis=-1, keepdims=True)
        yc = y - mean
        var = jnp.mean(yc * yc, axis=-1, keepdims=True)
        y = yc * jax.lax.rsqrt(var + _EPS)
    o_ref[0] = (x_ref[0].astype(jnp.float32) + y).astype(o_ref.dtype)  # residual


# ---------------------------------------------------------------------------
# Wrappers
# ---------------------------------------------------------------------------
def _im2col_reflect(x):
    """x: (N, C, H, W) -> patches^T (N, C*9, H*W); k = c*9 + kh*3 + kw.

    Column ordering matches a PyTorch conv weight flattened with
    weight.reshape(C_out, C_in*9).
    """
    n, c, h, w = x.shape
    xp = jnp.pad(x, ((0, 0), (0, 0), (1, 1), (1, 1)), mode="reflect")
    taps = [xp[:, :, kh:kh + h, kw:kw + w] for kh in range(3) for kw in range(3)]
    p = jnp.stack(taps, axis=2)                 # (N, C, 9, H, W)
    return p.reshape(n, c * 9, h * w)


def _conv_stage(patches_t, w_flat, bias, *, residual=None, use_norm=True,
                out_dtype=jnp.float32):
    """One fused stage: (conv 3x3 as matmul) + bias + SiLU + InstanceNorm [+ res].

    patches_t: (N, K, HW), w_flat: (C_out, K), bias: (C_out,),
    residual (optional): (N, C_out, HW). Returns (N, C_out, HW).
    """
    n, k, hw = patches_t.shape
    c_out = w_flat.shape[0]
    b2 = bias.reshape(c_out, 1)

    if residual is None:
        kern = functools.partial(_conv_act_norm_kernel, use_norm=use_norm)
        in_specs = [
            pl.BlockSpec((1, k, hw), lambda i: (i, 0, 0)),
            pl.BlockSpec((c_out, k), lambda i: (0, 0)),
            pl.BlockSpec((c_out, 1), lambda i: (0, 0)),
        ]
        operands = (patches_t, w_flat, b2)
    else:
        kern = functools.partial(_conv_act_norm_res_kernel, use_norm=use_norm)
        in_specs = [
            pl.BlockSpec((1, k, hw), lambda i: (i, 0, 0)),
            pl.BlockSpec((c_out, k), lambda i: (0, 0)),
            pl.BlockSpec((c_out, 1), lambda i: (0, 0)),
            pl.BlockSpec((1, c_out, hw), lambda i: (i, 0, 0)),
        ]
        operands = (patches_t, w_flat, b2, residual)

    return pl.pallas_call(
        kern,
        out_shape=jax.ShapeDtypeStruct((n, c_out, hw), out_dtype),
        grid_spec=pltpu.PrefetchScalarGridSpec(
            num_scalar_prefetch=0,
            grid=(n,),
            in_specs=in_specs,
            out_specs=pl.BlockSpec((1, c_out, hw), lambda i: (i, 0, 0)),
        ),
        compiler_params=pltpu.CompilerParams(
            dimension_semantics=("parallel",),   # batch tiles -> megacore / 2 TCs
            vmem_limit_bytes=32 * 1024 * 1024,   # safe on v5e/v6e/v7x
        ),
    )(*operands)


def res_block_forward(x, params, *, use_norm=True):
    """ResBlock.forward: x + norm2(silu(conv2(norm1(silu(conv1(x))))))."""
    n, c_in, h, w = x.shape
    hw = h * w
    w1, b1 = params["w1"], params["b1"]    # (h_c, c_in, 3, 3), (h_c,)
    w2, b2 = params["w2"], params["b2"]    # (c_out, h_c, 3, 3), (c_out,)
    h_c, c_out = w1.shape[0], w2.shape[0]

    # Stage 1: conv1 (3x3, reflect pad) + SiLU + InstanceNorm
    p1 = _im2col_reflect(x)                                      # (N, 9*c_in, HW)
    x0_t = _conv_stage(p1, w1.reshape(h_c, c_in * 9), b1,
                       use_norm=use_norm, out_dtype=x.dtype)     # (N, h_c, HW)

    # Stage 2: conv2 + SiLU + InstanceNorm + residual add
    x0 = x0_t.reshape(n, h_c, h, w)
    p2 = _im2col_reflect(x0)                                     # (N, 9*h_c, HW)
    x_res = x.reshape(n, c_in, hw)
    out_t = _conv_stage(p2, w2.reshape(c_out, h_c * 9), b2,
                        residual=x_res, use_norm=use_norm,
                        out_dtype=x.dtype)                        # (N, c_out, HW)
    return out_t.reshape(n, c_out, h, w)


# ---------------------------------------------------------------------------
# Pure-JAX reference (mirrors the PyTorch ResBlock with silu + InstanceNorm2d)
# ---------------------------------------------------------------------------
def _ref_res_block(x, params):
    def conv(x_, w_, b_):
        xp = jnp.pad(x_, ((0, 0), (0, 0), (1, 1), (1, 1)), mode="reflect")
        y = jax.lax.conv_general_dilated(
            xp, w_, window_strides=(1, 1), padding="VALID",
            dimension_numbers=("NCHW", "OIHW", "NCHW"))
        return y + b_[None, :, None, None]

    def inorm(x_):
        mean = jnp.mean(x_, axis=(2, 3), keepdims=True)
        var = jnp.mean((x_ - mean) ** 2, axis=(2, 3), keepdims=True)
        return (x_ - mean) * jax.lax.rsqrt(var + _EPS)

    x0 = inorm(jax.nn.silu(conv(x, params["w1"], params["b1"])))
    x1 = inorm(jax.nn.silu(conv(x0, params["w2"], params["b2"])))
    return x + x1


if __name__ == "__main__":
    key = jax.random.PRNGKey(0)
    kx, k1, k2, k3, k4 = jax.random.split(key, 5)

    batch, in_c, out_c, h_c, spatial = 2, 4, 4, 4, 16
    x = jax.random.normal(kx, (batch, in_c, spatial, spatial), jnp.float32)
    params = {
        "w1": jax.random.normal(k1, (h_c, in_c, 3, 3), jnp.float32) * 0.1,
        "b1": jax.random.normal(k2, (h_c,), jnp.float32) * 0.1,
        "w2": jax.random.normal(k3, (out_c, h_c, 3, 3), jnp.float32) * 0.1,
        "b2": jax.random.normal(k4, (out_c,), jnp.float32) * 0.1,
    }

    out = jax.block_until_ready(res_block_forward(x, params))
    ref = _ref_res_block(x, params)

    assert out.shape == x.shape
    max_err = float(jnp.max(jnp.abs(out - ref)))
    assert max_err < 5e-4, f"max abs err {max_err}"

    print("KERNEL_OK")
</pallas_src>

<mosaic_0001>
module attributes {stable_mosaic.version = 11 : i64} {
  func.func @_conv_act_norm_kernel(%arg0: i32, %arg1: memref<1x36x256xf32, #tpu.memory_space<vmem>>, %arg2: memref<4x36xf32, #tpu.memory_space<vmem>>, %arg3: memref<4x1xf32, #tpu.memory_space<vmem>>, %arg4: memref<1x4x256xf32, #tpu.memory_space<vmem>>) attributes {dimension_semantics = [#tpu.dimension_semantics<parallel>], iteration_bounds = array<i64: 2>, scalar_prefetch = 0 : i64, scratch_operands = 0 : i64, tpu.core_type = #tpu.core_type<tc>, window_params = [{transform_indices = @transform_0, window_bounds = array<i64: 1, 36, 256>}, {pipeline_mode = #tpu.pipeline_mode<synchronous>, transform_indices = @transform_1, window_bounds = array<i64: 4, 36>}, {pipeline_mode = #tpu.pipeline_mode<synchronous>, transform_indices = @transform_2, window_bounds = array<i64: 4, 1>}, {transform_indices = @transform_3, window_bounds = array<i64: 1, 4, 256>}]} {
    %c0 = arith.constant 0 : index
    %c0_0 = arith.constant 0 : index
    %c0_1 = arith.constant 0 : index
    %0 = vector.load %arg1[%c0, %c0_0, %c0_1] : memref<1x36x256xf32, #tpu.memory_space<vmem>>, vector<1x36x256xf32>
    %1 = vector.shape_cast %0 : vector<1x36x256xf32> to vector<36x256xf32>
    %c0_2 = arith.constant 0 : index
    %c0_3 = arith.constant 0 : index
    %2 = vector.load %arg2[%c0_2, %c0_3] : memref<4x36xf32, #tpu.memory_space<vmem>>, vector<4x36xf32>
    %cst = arith.constant dense<0.000000e+00> : vector<4x256xf32>
    %3 = tpu.matmul %2, %1, %cst {dimension_numbers = #tpu.dot_dimension_numbers<[1], [0], [0], [1], [0, 0, 1, 1], [], []>} : vector<4x36xf32>, vector<36x256xf32>, vector<4x256xf32> -> vector<4x256xf32>
    %c0_4 = arith.constant 0 : index
    %c0_5 = arith.constant 0 : index
    %4 = vector.load %arg3[%c0_4, %c0_5] : memref<4x1xf32, #tpu.memory_space<vmem>>, vector<4x1xf32>
    %5 = vector.broadcast %4 : vector<4x1xf32> to vector<4x256xf32>
    %6 = arith.addf %3, %5 : vector<4x256xf32>
    %7 = arith.negf %6 : vector<4x256xf32>
    %8 = math.exp %7 : vector<4x256xf32>
    %cst_6 = arith.constant 1.000000e+00 : f32
    %9 = vector.broadcast %cst_6 : f32 to vector<4x256xf32>
    %10 = arith.addf %9, %8 : vector<4x256xf32>
    %11 = arith.divf %9, %10 : vector<4x256xf32>
    %12 = arith.mulf %6, %11 : vector<4x256xf32>
    %cst_7 = arith.constant dense<0.000000e+00> : vector<4xf32>
    %13 = vector.multi_reduction <add>, %12, %cst_7 [1] : vector<4x256xf32> to vector<4xf32>
    %14 = vector.shape_cast %13 : vector<4xf32> to vector<4x1xf32>
    %cst_8 = arith.constant 2.560000e+02 : f32
    %15 = vector.broadcast %cst_8 : f32 to vector<4x1xf32>
    %16 = arith.divf %14, %15 : vector<4x1xf32>
    %17 = vector.broadcast %16 : vector<4x1xf32> to vector<4x256xf32>
    %18 = arith.subf %12, %17 : vector<4x256xf32>
    %19 = arith.mulf %18, %18 : vector<4x256xf32>
    %cst_9 = arith.constant dense<0.000000e+00> : vector<4xf32>
    %20 = vector.multi_reduction <add>, %19, %cst_9 [1] : vector<4x256xf32> to vector<4xf32>
    %21 = vector.shape_cast %20 : vector<4xf32> to vector<4x1xf32>
    %cst_10 = arith.constant 2.560000e+02 : f32
    %22 = vector.broadcast %cst_10 : f32 to vector<4x1xf32>
    %23 = arith.divf %21, %22 : vector<4x1xf32>
    %cst_11 = arith.constant 9.99999974E-6 : f32
    %24 = vector.broadcast %cst_11 : f32 to vector<4x1xf32>
    %25 = arith.addf %23, %24 : vector<4x1xf32>
    %26 = math.rsqrt %25 : vector<4x1xf32>
    %27 = vector.broadcast %26 : vector<4x1xf32> to vector<4x256xf32>
    %28 = arith.mulf %18, %27 : vector<4x256xf32>
    %c0_12 = arith.constant 0 : index
    %c0_13 = arith.constant 0 : index
    %c0_14 = arith.constant 0 : index
    %29 = vector.load %arg4[%c0_12, %c0_13, %c0_14] : memref<1x4x256xf32, #tpu.memory_space<vmem>>, vector<1x4x256xf32>
    %30 = vector.shape_cast %29 : vector<1x4x256xf32> to vector<4x256xf32>
    %31 = vector.shape_cast %28 : vector<4x256xf32> to vector<1x4x256xf32>
    tpu.vector_store %arg4[%c0_12, %c0_13, %c0_14], %31 {strides = array<i32>} : memref<1x4x256xf32, #tpu.memory_space<vmem>>, vector<1x4x256xf32>,
    return
  }
  func.func @transform_0(%arg0: i32) -> (i32, i32, i32) {
    %c0_i32 = arith.constant 0 : i32
    %c0_i32_0 = arith.constant 0 : i32
    %c0_i32_1 = arith.constant 0 : i32
    return %arg0, %c0_i32, %c0_i32_0 : i32, i32, i32
  }
  func.func @transform_1(%arg0: i32) -> (i32, i32) {
    %c0_i32 = arith.constant 0 : i32
    %c0_i32_0 = arith.constant 0 : i32
    %c0_i32_1 = arith.constant 0 : i32
    return %c0_i32, %c0_i32_0 : i32, i32
  }
  func.func @transform_2(%arg0: i32) -> (i32, i32) {
    %c0_i32 = arith.constant 0 : i32
    %c0_i32_0 = arith.constant 0 : i32
    %c0_i32_1 = arith.constant 0 : i32
    return %c0_i32, %c0_i32_0 : i32, i32
  }
  func.func @transform_3(%arg0: i32) -> (i32, i32, i32) {
    %c0_i32 = arith.constant 0 : i32
    %c0_i32_0 = arith.constant 0 : i32
    %c0_i32_1 = arith.constant 0 : i32
    return %arg0, %c0_i32, %c0_i32_0 : i32, i32, i32
  }
}

</mosaic_0001>

<llo_original>
// kernel: tpu_custom_call.1
$region0: #{tpu_custom_call.1}
  #allocation0 [shape = 'u32[]', space=smem, size = 0x4, offset = 0x4, fixed_abs, tag = 'smem constant byte address 0x4 - core index']
  #allocation1 [shape = 'u32[144,128]{1,0:T(1,128)}', space=vmem, size = 0x12000, scoped, tag = 'internal scratch']
  %s0 = inlined_call_operand.vmem [shape: f32[2,36,256], index: 0, kind: input, shape index: {}]
  %s1 = inlined_call_operand.vmem [shape: f32[4,36], index: 1, kind: input, shape index: {}]
  %s2 = inlined_call_operand.vmem [shape: f32[4,1], index: 2, kind: input, shape index: {}]
  %s3 = inlined_call_operand.hbm [shape: f32[2,4,256], index: 3, kind: output, shape index: {}]
  %s4 = sld [smem:[#allocation0]]
  $region45: #{tpu_custom_call.1} parent=0
    _
  %s6 = ssub.s32 1, %s4
  %s7 = scalar_select 0, %s6, %s4
  $region1: #{tpu_custom_call.1} parent=0
    #allocation2 [shape = 'u8[8192]{0}', space=vmem, size = 0x2000, scoped, tag = 'output window, operand 0']
    #allocation3 [shape = 's32[2]{0}', space=sflag, size = 0x8, scoped, tag = 'scoped memory for tpu_custom_call.1']
    %8 = vsyncpa [#allocation3], 0
    %s9 = scalar_lea.sflag [#allocation3], 1
    %10 = vsyncpa %s9, 0
    loop: start=0, step=1, limit=4
    $region2: #{tpu_custom_call.1} parent=1 // loop_pre_header
      _
    $region3: #{tpu_custom_call.1} parent=1 // loop_header
      %s12 = sphi 0, %s16
      %p13 = scmp.ge.s32.totalorder %s12, 4
      %s22 = sphi 0, %s24
      %s25 = sphi 0, %s22
      %s26 = sphi 0, %s25
      %s42 = sphi 0, %s26
      %s46 = sphi 0, %s46
      %s48 = sphi 0, %s46
      %s49 = sphi 0, %s48
      %s63 = sphi 0, %s49
      %s67 = sphi 0, %s67
      %s69 = sphi 0, %s67
      %s70 = sphi 0, %s69
      %s84 = sphi 0, %s70
      %s90 = sphi 0, %s92
      %s93 = sphi 0, %s90
      %s94 = sphi 0, %s93
      %s110 = sphi 0, %s94
    $region4: #{tpu_custom_call.1} parent=1 // loop_header_branch
      %15 = sbr.rel (%p13) target = $region8
    $region5: #{tpu_custom_call.1} parent=1 // loop_body
      %s17 = ssub.s32 %s12, 1
      %s18 = ssub.s32 %s12, 2
      %s19 = sadd.s32 %s12, 1
      %s20 = ssub.s32 %s12, %s19
      %p21 = scmp.eq.s32.totalorder %s20, 0
      %s23 = sadd.s32 %s22, 1
      %s24 = scalar_select %p21, %s22, %s23
      %p27 = pneg %p21
      %p28 = scmp.eq.s32.totalorder %s12, 1
      %p29 = por %p27, %p28
      %p30 = scmp.ne.s32.totalorder %s22, %s25
      %p31 = scmp.eq.s32.totalorder %s12, 0
      %p32 = por %p30, %p31
      %p33 = scmp.ne.s32.totalorder %s22, %s25
      %p34 = scmp.eq.s32.totalorder %s17, 1
      %p35 = por %p33, %p34
      %p36 = scmp.ne.s32.totalorder %s25, %s26
      %p37 = scmp.eq.s32.totalorder %s17, 0
      %p38 = por %p36, %p37
      %p39 = scmp.ne.s32.totalorder %s25, %s26
      %p40 = scmp.eq.s32.totalorder %s18, 1
      %p41 = por %p39, %p40
      %p43 = scmp.ne.s32.totalorder %s26, %s42
      %p44 = scmp.eq.s32.totalorder %s18, 0
      %p45 = por %p43, %p44
      %s47 = sadd.s32 %s46, 1
      %p50 = scmp.eq.s32.totalorder %s12, 1
      %p51 = scmp.ne.s32.totalorder %s46, %s48
      %p52 = scmp.eq.s32.totalorder %s12, 0
      %p53 = por %p51, %p52
      %p54 = scmp.ne.s32.totalorder %s46, %s48
      %p55 = scmp.eq.s32.totalorder %s17, 1
      %p56 = por %p54, %p55
      %p57 = scmp.ne.s32.totalorder %s48, %s49
      %p58 = scmp.eq.s32.totalorder %s17, 0
      %p59 = por %p57, %p58
      %p60 = scmp.ne.s32.totalorder %s48, %s49
      %p61 = scmp.eq.s32.totalorder %s18, 1
      %p62 = por %p60, %p61
      %p64 = scmp.ne.s32.totalorder %s49, %s63
      %p65 = scmp.eq.s32.totalorder %s18, 0
      %p66 = por %p64, %p65
      %s68 = sadd.s32 %s67, 1
      %p71 = scmp.eq.s32.totalorder %s12, 1
      %p72 = scmp.ne.s32.totalorder %s67, %s69
      %p73 = scmp.eq.s32.totalorder %s12, 0
      %p74 = por %p72, %p73
      %p75 = scmp.ne.s32.totalorder %s67, %s69
      %p76 = scmp.eq.s32.totalorder %s17, 1
      %p77 = por %p75, %p76
      %p78 = scmp.ne.s32.totalorder %s69, %s70
      %p79 = scmp.eq.s32.totalorder %s17, 0
      %p80 = por %p78, %p79
      %p81 = scmp.ne.s32.totalorder %s69, %s70
      %p82 = scmp.eq.s32.totalorder %s18, 1
      %p83 = por %p81, %p82
      %p85 = scmp.ne.s32.totalorder %s70, %s84
      %p86 = scmp.eq.s32.totalorder %s18, 0
      %p87 = por %p85, %p86
      %s88 = ssub.s32 %s12, %s19
      %p89 = scmp.eq.s32.totalorder %s88, 0
      %s91 = sadd.s32 %s90, 1
      %s92 = scalar_select %p89, %s90, %s91
      %p95 = pneg %p89
      %p96 = scmp.eq.s32.totalorder %s12, 1
      %p97 = por %p95, %p96
      %p98 = scmp.ne.s32.totalorder %s90, %s93
      %p99 = scmp.eq.s32.totalorder %s12, 0
      %p100 = por %p98, %p99
      %p101 = scmp.ne.s32.totalorder %s90, %s93
      %p102 = scmp.eq.s32.totalorder %s17, 1
      %p103 = por %p101, %p102
      %p104 = scmp.ne.s32.totalorder %s93, %s94
      %p105 = scmp.eq.s32.totalorder %s17, 0
      %p106 = por %p104, %p105
      %p107 = scmp.ne.s32.totalorder %s93, %s94
      %p108 = scmp.eq.s32.totalorder %s18, 1
      %p109 = por %p107, %p108
      %p111 = scmp.ne.s32.totalorder %s94, %s110
      %p112 = scmp.eq.s32.totalorder %s18, 0
      %p113 = por %p111, %p112
      %p114 = scmp.le.s32.totalorder 1, %s12
      %p115 = scmp.lt.s32.totalorder %s12, 3
      %p116 = pnand %p114, %p115
      %p117 = pneg %p116
      // Predicated region
      $region9: #{tpu_custom_call.1} parent=5 // pred_check
        _
      $region10: #{tpu_custom_call.1} parent=5 // pred_check_branch
        %119 = sbr.rel (%p116) target = $region12
      $region11: #{tpu_custom_call.1} parent=5 // pred_region
        %s120 = ssub.s32 %s12, 1
        // Predicated region
        $region13: #{tpu_custom_call.1} parent=11 // pred_check
          %p121 = pneg %p59
        $region14: #{tpu_custom_call.1} parent=11 // pred_check_branch
          %123 = sbr.rel (%p121) target = $region16
        $region15: #{tpu_custom_call.1} parent=11 // pred_region
          _
        $region16: #{tpu_custom_call.1} parent=11 // pred_fallthru
          _
        // Predicated region
        $region17: #{tpu_custom_call.1} parent=11 // pred_check
          %p124 = pneg %p80
        $region18: #{tpu_custom_call.1} parent=11 // pred_check_branch
          %126 = sbr.rel (%p124) target = $region20
        $region19: #{tpu_custom_call.1} parent=11 // pred_region
          _
        $region20: #{tpu_custom_call.1} parent=11 // pred_fallthru
          _
      $region12: #{tpu_custom_call.1} parent=5 // pred_fallthru
        _
      %p127 = scmp.lt.s32.totalorder %s12, 2
      // Predicated region
      $region21: #{tpu_custom_call.1} parent=5 // pred_check
        %p128 = pneg %p127
      $region22: #{tpu_custom_call.1} parent=5 // pred_check_branch
        %130 = sbr.rel (%p128) target = $region24
      $region23: #{tpu_custom_call.1} parent=5 // pred_region
        // Predicated region
        $region25: #{tpu_custom_call.1} parent=23 // pred_check
          %p131 = pneg %p32
        $region26: #{tpu_custom_call.1} parent=23 // pred_check_branch
          %133 = sbr.rel (%p131) target = $region28
        $region27: #{tpu_custom_call.1} parent=23 // pred_region
          %p134 = scmp.lt.s32.totalorder %s12, 1
          %s135 = scalar_select %p134, %s12, 1
          %s136 = smul.addr %s135, 10
          %s137 = smul.addr %s136, 8
          %s138 = scalar_lea.vmem %s0, %s137
        $region28: #{tpu_custom_call.1} parent=23 // pred_fallthru
          _
      $region24: #{tpu_custom_call.1} parent=5 // pred_fallthru
        _
      %p139 = scmp.le.s32.totalorder 1, %s12
      %p140 = scmp.lt.s32.totalorder %s12, 3
      %p141 = pnand %p139, %p140
      %p142 = pneg %p141
      // Predicated region
      $region29: #{tpu_custom_call.1} parent=5 // pred_check
        _
      $region30: #{tpu_custom_call.1} parent=5 // pred_check_branch
        %144 = sbr.rel (%p141) target = $region32
      $region31: #{tpu_custom_call.1} parent=5 // pred_region
        %s145 = ssub.s32 %s12, 1
        %p146 = scmp.lt.s32.totalorder %s17, 1
        %s147 = scalar_select %p146, %s17, 1
        %s148 = smul.addr %s147, 10
        %s149 = smul.addr %s148, 8
        %s150 = scalar_lea.vmem %s0, %s149
        %p151 = pneg %p38
        %p152 = pneg %p35
        %p153 = pneg %p59
        %p154 = pneg %p56
        %p155 = pneg %p80
        %p156 = pneg %p77
        %p157 = pneg %p106
        %p158 = pneg %p103
        %s159 = sand.u32 %s93, 1
        %s160 = scalar_lea.sflag [#allocation3], %s159
        %s161 = sand.u32 %s93, 1
        %s162 = smul.addr %s161, 8
        %s163 = scalar_lea.vmem [#allocation2], %s162
        %p164 = scmp.lt.s32.totalorder %s17, 1
        %s165 = scalar_select %p164, %s17, 1
        %s166 = smul.addr %s165, 10
        %s167 = smul.addr %s166, 8
        %s168 = scalar_lea.vmem %s0, %s167
        %v169 = vld [vmem:[%s168] sm:$0xff]
        %v170 = vld [vmem:[%s168 + $0x8] sm:$0xff]
        %v171 = vld [vmem:[%s168 + $0x10] sm:$0xff]
        %v172 = vld [vmem:[%s168 + $0x18] sm:$0xff]
        %v173 = vld [vmem:[%s168 + $0x20] sm:$0xff]
        %v174 = vld [vmem:[%s168 + $0x28] sm:$0xff]
        %v175 = vld [vmem:[%s168 + $0x30] sm:$0xff]
        %v176 = vld [vmem:[%s168 + $0x38] sm:$0xff]
        %v177 = vld [vmem:[%s168 + $0x40] sm:$0xf]
        %v178 = vld [vmem:[%s168 + $0x48] sm:$0xf]
        %v179 = vld [vmem:[%s1] sm:$0xf]
        %v180 = vld [vmem:[%s2] sm:$0xf]
        %182 = vset.pattern.permute.xlu0 0
        %183 = vperm.xlu0 %182, %v180
        %v184 = vpop.permute.xlu0 %183
        %vm186 = vcmask 293888
        %v188 = vsel %vm186, %v179, 0
        %vm190 = vcmask 1043456
        %v192 = vsel %vm190, %v177, 0
        %v195 = vsel %vm190, %v178, 0
        %197 = vmatprep.subr.mxu0 0.0
        %198 = vmatpush1.msra.mxu0 0.0
        %199 = vmatprep.subr.mxu0 0.0
        %200 = vmatpush1.msra.mxu0 0.0
        %201 = vmatprep.subr.mxu0 0.0
        %202 = vmatpush1.msra.mxu0 0.0
        %203 = vmatprep.subr.mxu0 0.0
        %204 = vmatpush1.msra.mxu0 0.0
        %205 = vmatprep.subr.mxu0 0.0
        %206 = vmatpush1.msra.mxu0 0.0
        %207 = vmatprep.subr.mxu0 0.0
        %208 = vmatpush1.msra.mxu0 0.0
        %209 = vmatprep.subr.mxu0 0.0
        %210 = vmatpush1.msra.mxu0 0.0
        %211 = vmatprep.subr.mxu0 0.0
        %212 = vmatpush1.msra.mxu0 0.0
        %213 = vmatprep.subr.mxu0 0.0
        %214 = vmatpush1.msra.mxu0 0.0
        %215 = vmatprep.subr.mxu0 0.0
        %216 = vmatpush1.msra.mxu0 0.0
        %217 = vmatprep.subr.mxu0 0.0
        %218 = vmatpush1.msra.mxu0 0.0
        %219 = vmatprep.subr.mxu0 %v195
        %220 = vmatpush1.msra.mxu0 %v192
        %221 = vmatprep.subr.mxu0 %v176
        %222 = vmatpush1.msra.mxu0 %v175
        %223 = vmatprep.subr.mxu0 %v174
        %224 = vmatpush1.msra.mxu0 %v173
        %225 = vmatprep.subr.mxu0 %v172
        %226 = vmatpush1.msra.mxu0 %v171
        %227 = vmatprep.subr.mxu0 %v170
        %228 = vmatpush1.msra.mxu0 %v169
        %229 = vmatprep.subr.mxu0 0.0
        %230 = vmatpush2.msra.mxu0 0.0
        %231 = vmatprep.subr.mxu0 0.0
        %232 = vmatpush2.msra.mxu0 0.0
        %233 = vmatprep.subr.mxu0 0.0
        %234 = vmatpush2.msra.mxu0 0.0
        %235 = vmatprep.subr.mxu0 0.0
        %236 = vmatpush2.msra.mxu0 0.0
        %237 = vmatprep.subr.mxu0 0.0
        %238 = vmatpush2.msra.mxu0 0.0
        %239 = vmatprep.subr.mxu0 0.0
        %240 = vmatpush2.msra.mxu0 0.0
        %241 = vmatprep.subr.mxu0 0.0
        %242 = vmatpush2.msra.mxu0 0.0
        %243 = vmatprep.subr.mxu0 0.0
        %244 = vmatpush2.msra.mxu0 0.0
        %245 = vmatprep.subr.mxu0 0.0
        %246 = vmatpush2.msra.mxu0 0.0
        %247 = vmatprep.subr.mxu0 0.0
        %248 = vmatpush2.msra.mxu0 0.0
        %249 = vmatprep.subr.mxu0 0.0
        %250 = vmatpush2.msra.mxu0 0.0
        %251 = vmatprep.subr.mxu0 0.0
        %252 = vmatpush2.msra.mxu0 0.0
        %253 = vmatprep.subr.mxu0 0.0
        %254 = vmatpush2.msra.mxu0 0.0
        %255 = vmatprep.subr.mxu0 0.0
        %256 = vmatpush2.msra.mxu0 0.0
        %257 = vmatprep.subr.mxu0 0.0
        %258 = vmatpush2.msra.mxu0 0.0
        %259 = vmatprep.subr.mxu0 0.0
        %260 = vmatpush2.msra.mxu0 0.0
        %261 = vmatprep.mubr.f32.mxu0 0.0
        %262 = vmatmul.mubr.f32.gmra.mxu0 %v188
        %v263 = vpop.f32.mrf.mxu0
        %v264 = vadd.f32 %v184, %v263
        %v265 = vpop.f32.mrf.mxu0
        %v266 = vadd.f32 %v184, %v265
        %267 = vdwg.mxu0
        %v268 = vxor.u32 %v264, 2147483648
        %v269 = vxor.u32 %v266, 2147483648
        %v270 = vmul.f32 %v268, 1.442695
        %v271 = vpow.pop %v270
        %v272 = vmul.f32 %v269, 1.442695
        %v273 = vpow.pop %v272
        %v274 = vadd.f32 %v271, 1.0
        %v275 = vadd.f32 %v273, 1.0
        %v276 = vrcp.pop %v274
        %v277 = vmul.f32 1.0, %v276
        %v278 = vrcp.pop %v275
        %v279 = vmul.f32 1.0, %v278
        %v280 = vmul.f32 %v264, %v277
        %v281 = vmul.f32 %v266, %v279
        %v282 = vsel %vm190, %v280, 0.0
        %v283 = vsel %vm190, %v281, 0.0
        %v284 = vadd.f32 %v282, %v283
        %285 = vadd.xlane.f32.xlu0 %v284
        %v286 = vpop.xlane.xlu0 %285
        %v287 = vrcp.pop 256.0
        %v288 = vmul.f32 %v286, %v287
        %v289 = vsub.f32 %v280, %v288
        %v290 = vsub.f32 %v281, %v288
        %v291 = vmul.f32 %v289, %v289
        %v292 = vmul.f32 %v290, %v290
        %v293 = vsel %vm190, %v291, 0.0
        %v294 = vsel %vm190, %v292, 0.0
        %v295 = vadd.f32 %v293, %v294
        %296 = vadd.xlane.f32.xlu0 %v295
        %v297 = vpop.xlane.xlu0 %296
        %v298 = vmul.f32 %v297, %v287
        %v299 = vadd.f32 %v298, 1e-05
        %v300 = vrsqrt.pop %v299
        %v301 = vmul.f32 %v289, %v300
        %v302 = vmul.f32 %v290, %v300
        %v305 = vcombine.low %v301, %v302
        %307 = vst [vmem:[%s163] sm:$0xff] %v305
        %s308 = sand.u32 %s93, 1
        %s309 = scalar_lea.sflag [#allocation3], %s308
        %s310 = sand.u32 %s93, 1
        %s311 = smul.addr %s310, 8
        %s312 = scalar_lea.vmem [#allocation2], %s311
        // Predicated region
        $region33: #{tpu_custom_call.1} parent=31 // pred_check
          %p313 = pneg %p103
        $region34: #{tpu_custom_call.1} parent=31 // pred_check_branch
          %315 = sbr.rel (%p313) target = $region36
        $region35: #{tpu_custom_call.1} parent=31 // pred_region
          %s317 = ssub.s32 128, 128
          %318 = vsyncadd %s309, %s317
          %s319 = smul.addr %s17, 2
          %s320 = smul.addr %s319, 64
          %s321 = scalar_lea.hbm %s3, %s320
          %s323 = sshll.u32 %s312, 4
          %s324 = int_to_ptr.vmem [resolvable:$true] %s323
          %326 = dma.vmem_to_hbm [thread:$0]  %s324, 128, %s321, %s309
        $region36: #{tpu_custom_call.1} parent=31 // pred_fallthru
          _
      $region32: #{tpu_custom_call.1} parent=5 // pred_fallthru
        _
      %p327 = scmp.le.s32.totalorder 2, %s12
      // Predicated region
      $region37: #{tpu_custom_call.1} parent=5 // pred_check
        %p328 = pneg %p327
      $region38: #{tpu_custom_call.1} parent=5 // pred_check_branch
        %330 = sbr.rel (%p328) target = $region40
      $region39: #{tpu_custom_call.1} parent=5 // pred_region
        %s331 = ssub.s32 %s12, 2
        // Predicated region
        $region41: #{tpu_custom_call.1} parent=39 // pred_check
          %p332 = pneg %p109
        $region42: #{tpu_custom_call.1} parent=39 // pred_check_branch
          %334 = sbr.rel (%p332) target = $region44
        $region43: #{tpu_custom_call.1} parent=39 // pred_region
          %s335 = sand.u32 %s94, 1
          %s336 = scalar_lea.sflag [#allocation3], %s335
          %s337 = sand.u32 %s94, 1
          %s338 = smul.addr %s337, 8
          %s339 = scalar_lea.vmem [#allocation2], %s338
          %340 = dma.done %s336, 128
        $region44: #{tpu_custom_call.1} parent=39 // pred_fallthru
          _
      $region40: #{tpu_custom_call.1} parent=5 // pred_fallthru
        _
    $region6: #{tpu_custom_call.1} parent=1 // loop_footer
      %s16 = sadd.s32 1, %s12
    $region7: #{tpu_custom_call.1} parent=1 // loop_footer_branch
      %11 = sbr.rel target = $region3
    $region8: #{tpu_custom_call.1} parent=1 // loop_exit
      _
    %341 = vsyncpa [#allocation3], 1
    %s342 = scalar_lea.sflag [#allocation3], 1
    %343 = vsyncpa %s342, 1

</llo_original>
